<compile_context>
chip_gen: v6e
topology: v6e:2x2x1
jax: 0.10.0
libtpu: 0.0.40
codegen_flags: <defaults>
</compile_context>

<pallas_src>
import functools
import math

import jax
import jax.numpy as jnp
from jax.experimental import pallas as pl
from jax.experimental.pallas import tpu as pltpu


def build_sinc_filters(low_freqs, bandwidths, kernel_size, sfreq, min_freq=1.0):
    """JAX port of _SincFilter.build_sinc_filters, returned as [K, F]."""
    K = kernel_size
    half = K // 2
    num_filters = low_freqs.shape[1]

    # torch.hamming_window(K, periodic=False)[:K//2]
    n = jnp.arange(K, dtype=jnp.float32)
    window_full = 0.54 - 0.46 * jnp.cos(2.0 * math.pi * n / (K - 1))
    window = window_full[:half][:, None]                        # (half, 1)

    # n_pi buffer
    n_pi = (jnp.arange(-half, 0, dtype=jnp.float32) / sfreq * 2.0 * math.pi)[:, None]

    low = min_freq + jnp.abs(low_freqs)                         # (1, F)
    high = jnp.clip(low + jnp.abs(bandwidths), min_freq, sfreq / 2.0)
    bw = high - low                                             # (1, F)

    lo = n_pi * low                                             # (half, F)
    hi = n_pi * high                                            # (half, F)
    filters_left = (jnp.sin(hi) - jnp.sin(lo)) / (n_pi / 2.0)
    filters_left = filters_left * window
    filters_left = filters_left / (2.0 * bw)                    # (half, F)

    filters_right = filters_left[::-1, :]                       # flip kernel axis
    ones = jnp.ones((1, num_filters), dtype=jnp.float32)
    filters = jnp.concatenate([filters_left, ones, filters_right], axis=0)  # (K, F)

    # torch.std() is unbiased (ddof=1) over all elements
    filters = filters / jnp.std(filters, ddof=1)
    return filters


def _sinc_conv_kernel(w_ref, xpad_ref, o_ref, *, kernel_size, padded_samples,
                      num_filters, chunk):
    # w_ref   : SMEM [K//2 + 1, F]  half tap table (row K//2 = center tap,
    #                               identical scalar for every filter)
    # xpad_ref: VMEM [TR, S_pad + K - 1]  zero-padded rows
    # o_ref   : VMEM [F, TR, S_pad]  filter-major -> full-width unmasked stores
    K = kernel_size
    half = K // 2
    w_center = w_ref[half, 0]

    # Iterate the sample axis in lane-aligned chunks so only ~(half + 3)
    # chunk-sized temporaries are live at a time (no K full-tile copies).
    for start in range(0, padded_samples, chunk):               # static loop
        width = min(chunk, padded_samples - start)              # multiple of 128
        xc = xpad_ref[:, start:start + width + K - 1]           # [TR, width+K-1]
        # Symmetric-pair sums shared across all filters: w[k,f] == w[K-1-k,f].
        sym = [xc[:, k:k + width] + xc[:, K - 1 - k:K - 1 - k + width]
               for k in range(half)]
        center = xc[:, half:half + width] * w_center            # shared center term
        for f in range(num_filters):                            # static, F small
            acc = center
            for k in range(half):                               # static, K small
                acc = acc + sym[k] * w_ref[k, f]
            o_ref[f, :, start:start + width] = acc.astype(o_ref.dtype)


def _round_up(x, m):
    return ((x + m - 1) // m) * m


def _vmem_capacity_bytes():
    try:
        return int(pltpu.get_tpu_info().vmem_capacity_bytes)
    except Exception:
        return 64 * 1024 * 1024   # conservative fallback (v7x-sized)


def _vmem_limit_bytes(vmem_cap):
    # ~8 MiB headroom below physical capacity; never below the 32 MiB default.
    lim = min(vmem_cap * 3 // 4, vmem_cap - (8 << 20))
    return int(max(lim, 32 << 20))


def _pick_row_tile(num_rows, padded_samples, kernel_size, num_filters, vmem_cap):
    # Double-buffered input + output blocks should fit in roughly a third of
    # VMEM, leaving the rest for compiler scratch (chunk temporaries) and
    # headroom.  Cap at 256 rows: per-step overhead (~0.35us) is already
    # amortized there and bigger tiles only inflate row-padding waste and
    # shorten the DMA/compute pipeline.
    bytes_per_row = 4 * ((padded_samples + kernel_size - 1)
                         + num_filters * padded_samples)
    budget = vmem_cap // 3
    tr = budget // max(2 * bytes_per_row, 1)
    tr = max(8, min(int(tr), 256))
    tr -= tr % 8
    # Keep >= 2 grid steps whenever there is more than one sublane-tile of
    # rows, so dimension_semantics=("parallel",) can shard across the two
    # TensorCores on v7x.
    if num_rows > 8:
        tr = min(tr, _round_up((num_rows + 1) // 2, 8))
    tr = max(8, min(tr, _round_up(num_rows, 8)))
    return tr


def sinc_filter_forward(inputs, low_freqs, bandwidths, kernel_size, sfreq,
                        min_freq=1.0):
    """inputs: [B, C, S, 1]  ->  [B, C, S, F]  (padding='same')."""
    assert kernel_size % 2 == 1, "Kernel size must be odd."
    B, C, S, one = inputs.shape
    assert one == 1
    K = kernel_size
    half = K // 2
    num_filters = low_freqs.shape[1]

    filters = build_sinc_filters(low_freqs, bandwidths, K, sfreq, min_freq)  # [K, F]
    # The kernel relies on w[k,f] == w[K-1-k,f] and a filter-independent
    # center tap; both are structural properties of build_sinc_filters (the
    # right half is the flipped left half; center row is ones / global std),
    # so only the first K//2 + 1 rows are shipped to SMEM.
    filters_half = filters[:half + 1]                                        # [half+1, F]

    R = B * C
    S_pad = _round_up(S, 128)        # lane-dense output -> unmasked full-width stores
    x = inputs[..., 0].reshape(R, S).astype(jnp.float32)

    vmem_cap = _vmem_capacity_bytes()
    TR = _pick_row_tile(R, S_pad, K, num_filters, vmem_cap)
    R_pad = _round_up(R, TR)

    # Zero-pad rows up to R_pad and samples by K//2 left, K//2 + (S_pad - S) right.
    xpad = jnp.pad(x, ((0, R_pad - R), (half, half + (S_pad - S))))  # [R_pad, S_pad+K-1]

    grid = (R_pad // TR,)
    chunk = min(512, S_pad)          # lane chunk, always a multiple of 128

    cost = pl.CostEstimate(
        flops=2 * K * num_filters * R * S,
        transcendentals=0,
        bytes_accessed=4 * (R * (S + K - 1) + num_filters * R * S),
    )

    out = pl.pallas_call(
        functools.partial(_sinc_conv_kernel, kernel_size=K,
                          padded_samples=S_pad, num_filters=num_filters,
                          chunk=chunk),
        out_shape=jax.ShapeDtypeStruct((num_filters, R_pad, S_pad), jnp.float32),
        grid=grid,
        in_specs=[
            # Tiny half-tap table -> SMEM, read as scalars inside the kernel.
            pl.BlockSpec(memory_space=pltpu.MemorySpace.SMEM),
            pl.BlockSpec((TR, S_pad + K - 1), lambda i: (i, 0)),
            # TODO(synk): if a trace shows exposed input DMA after the compute
            # cuts, add pipeline_mode=pl.Buffered(3) to the xpad spec above.
        ],
        out_specs=pl.BlockSpec((num_filters, TR, S_pad), lambda i: (0, i, 0)),
        compiler_params=pltpu.CompilerParams(
            dimension_semantics=("parallel",),
            vmem_limit_bytes=_vmem_limit_bytes(vmem_cap),
        ),
        cost_estimate=cost,
    )(filters_half, xpad)

    # [F, R_pad, S_pad] -> [B, C, S, F]  (drop padding, move F to minor axis to
    # honor the torch module's output layout).
    out = out[:, :R, :S].reshape(num_filters, B, C, S)
    return jnp.transpose(out, (1, 2, 3, 0))


if __name__ == "__main__":
    key = jax.random.PRNGKey(0)
    B, C, S = 2, 4, 16
    num_filters = 8
    kernel_size = 9
    sfreq = 128.0

    k_in, _ = jax.random.split(key)
    inputs = jax.random.normal(k_in, (B, C, S, 1), dtype=jnp.float32)

    # Deterministic parameter init (shapes as in _SincFilter.__init__):
    #   low_freqs param: (1, num_filters); bandwidths param: (1, num_filters)
    low_freqs = jnp.linspace(1.0, 40.0, num_filters, dtype=jnp.float32)[None, :]
    bandwidths = jnp.full((1, num_filters), 4.0, dtype=jnp.float32)

    # Pin the invariants the kernel's symmetry optimization relies on.
    filt = build_sinc_filters(low_freqs, bandwidths, kernel_size, sfreq)  # [K, F]
    assert bool(jnp.allclose(filt, filt[::-1, :])), "sinc filters must be symmetric"
    assert bool(jnp.allclose(filt[kernel_size // 2], filt[kernel_size // 2, 0])), \
        "center tap must be filter-independent"

    out = sinc_filter_forward(inputs, low_freqs, bandwidths, kernel_size, sfreq)
    out = jax.block_until_ready(out)
    assert out.shape == (B, C, S, num_filters), out.shape
    assert bool(jnp.all(jnp.isfinite(out)))

    # Pure-JAX reference of the same 'same'-padded cross-correlation.
    xp = jnp.pad(inputs[..., 0].astype(jnp.float32),
                 ((0, 0), (0, 0), (kernel_size // 2, kernel_size // 2)))
    ref = jnp.zeros((B, C, S, num_filters), jnp.float32)
    for k in range(kernel_size):
        ref = ref + xp[:, :, k:k + S, None] * filt[k][None, None, None, :]
    assert jnp.allclose(out, ref, atol=1e-4, rtol=1e-4), \
        float(jnp.max(jnp.abs(out - ref)))

    print("KERNEL_OK")
</pallas_src>

<mosaic_0001>
module attributes {stable_mosaic.version = 11 : i64} {
  func.func @_sinc_conv_kernel(%arg0: i32, %arg1: memref<5x8xf32, #tpu.memory_space<smem>>, %arg2: memref<8x136xf32, #tpu.memory_space<vmem>>, %arg3: memref<8x8x128xf32, #tpu.memory_space<vmem>>) attributes {dimension_semantics = [#tpu.dimension_semantics<parallel>], iteration_bounds = array<i64: 1>, scalar_prefetch = 0 : i64, scratch_operands = 0 : i64, tpu.core_type = #tpu.core_type<tc>, window_params = [{transform_indices = @transform_0, window_bounds = array<i64: 5, 8>}, {transform_indices = @transform_1, window_bounds = array<i64: 8, 136>}, {transform_indices = @transform_2, window_bounds = array<i64: 8, 8, 128>}]} {
    %c4 = arith.constant 4 : index
    %c0 = arith.constant 0 : index
    %0 = memref.load %arg1[%c4, %c0] : memref<5x8xf32, #tpu.memory_space<smem>>
    %c0_0 = arith.constant 0 : index
    %c0_1 = arith.constant 0 : index
    %1 = vector.load %arg2[%c0_0, %c0_1] : memref<8x136xf32, #tpu.memory_space<vmem>>, vector<8x136xf32>
    %2 = vector.extract_strided_slice %1 {offsets = [0, 0], sizes = [8, 128], strides = [1, 1]} : vector<8x136xf32> to vector<8x128xf32>
    %3 = vector.extract_strided_slice %1 {offsets = [0, 8], sizes = [8, 128], strides = [1, 1]} : vector<8x136xf32> to vector<8x128xf32>
    %4 = arith.addf %2, %3 : vector<8x128xf32>
    %5 = vector.extract_strided_slice %1 {offsets = [0, 1], sizes = [8, 128], strides = [1, 1]} : vector<8x136xf32> to vector<8x128xf32>
    %6 = vector.extract_strided_slice %1 {offsets = [0, 7], sizes = [8, 128], strides = [1, 1]} : vector<8x136xf32> to vector<8x128xf32>
    %7 = arith.addf %5, %6 : vector<8x128xf32>
    %8 = vector.extract_strided_slice %1 {offsets = [0, 2], sizes = [8, 128], strides = [1, 1]} : vector<8x136xf32> to vector<8x128xf32>
    %9 = vector.extract_strided_slice %1 {offsets = [0, 6], sizes = [8, 128], strides = [1, 1]} : vector<8x136xf32> to vector<8x128xf32>
    %10 = arith.addf %8, %9 : vector<8x128xf32>
    %11 = vector.extract_strided_slice %1 {offsets = [0, 3], sizes = [8, 128], strides = [1, 1]} : vector<8x136xf32> to vector<8x128xf32>
    %12 = vector.extract_strided_slice %1 {offsets = [0, 5], sizes = [8, 128], strides = [1, 1]} : vector<8x136xf32> to vector<8x128xf32>
    %13 = arith.addf %11, %12 : vector<8x128xf32>
    %14 = vector.extract_strided_slice %1 {offsets = [0, 4], sizes = [8, 128], strides = [1, 1]} : vector<8x136xf32> to vector<8x128xf32>
    %15 = vector.broadcast %0 : f32 to vector<8x128xf32>
    %16 = arith.mulf %14, %15 : vector<8x128xf32>
    %c0_2 = arith.constant 0 : index
    %c0_3 = arith.constant 0 : index
    %17 = memref.load %arg1[%c0_2, %c0_3] : memref<5x8xf32, #tpu.memory_space<smem>>
    %18 = vector.broadcast %17 : f32 to vector<8x128xf32>
    %19 = arith.mulf %4, %18 : vector<8x128xf32>
    %20 = arith.addf %16, %19 : vector<8x128xf32>
    %c1 = arith.constant 1 : index
    %c0_4 = arith.constant 0 : index
    %21 = memref.load %arg1[%c1, %c0_4] : memref<5x8xf32, #tpu.memory_space<smem>>
    %22 = vector.broadcast %21 : f32 to vector<8x128xf32>
    %23 = arith.mulf %7, %22 : vector<8x128xf32>
    %24 = arith.addf %20, %23 : vector<8x128xf32>
    %c2 = arith.constant 2 : index
    %c0_5 = arith.constant 0 : index
    %25 = memref.load %arg1[%c2, %c0_5] : memref<5x8xf32, #tpu.memory_space<smem>>
    %26 = vector.broadcast %25 : f32 to vector<8x128xf32>
    %27 = arith.mulf %10, %26 : vector<8x128xf32>
    %28 = arith.addf %24, %27 : vector<8x128xf32>
    %c3 = arith.constant 3 : index
    %c0_6 = arith.constant 0 : index
    %29 = memref.load %arg1[%c3, %c0_6] : memref<5x8xf32, #tpu.memory_space<smem>>
    %30 = vector.broadcast %29 : f32 to vector<8x128xf32>
    %31 = arith.mulf %13, %30 : vector<8x128xf32>
    %32 = arith.addf %28, %31 : vector<8x128xf32>
    %c0_7 = arith.constant 0 : index
    %c0_8 = arith.constant 0 : index
    %c0_9 = arith.constant 0 : index
    %33 = vector.load %arg3[%c0_7, %c0_8, %c0_9] : memref<8x8x128xf32, #tpu.memory_space<vmem>>, vector<1x8x128xf32>
    %34 = vector.shape_cast %33 : vector<1x8x128xf32> to vector<8x128xf32>
    %35 = vector.shape_cast %32 : vector<8x128xf32> to vector<1x8x128xf32>
    tpu.vector_store %arg3[%c0_7, %c0_8, %c0_9], %35 {strides = array<i32>} : memref<8x8x128xf32, #tpu.memory_space<vmem>>, vector<1x8x128xf32>,
    %c0_10 = arith.constant 0 : index
    %c1_11 = arith.constant 1 : index
    %36 = memref.load %arg1[%c0_10, %c1_11] : memref<5x8xf32, #tpu.memory_space<smem>>
    %37 = vector.broadcast %36 : f32 to vector<8x128xf32>
    %38 = arith.mulf %4, %37 : vector<8x128xf32>
    %39 = arith.addf %16, %38 : vector<8x128xf32>
    %c1_12 = arith.constant 1 : index
    %c1_13 = arith.constant 1 : index
    %40 = memref.load %arg1[%c1_12, %c1_13] : memref<5x8xf32, #tpu.memory_space<smem>>
    %41 = vector.broadcast %40 : f32 to vector<8x128xf32>
    %42 = arith.mulf %7, %41 : vector<8x128xf32>
    %43 = arith.addf %39, %42 : vector<8x128xf32>
    %c2_14 = arith.constant 2 : index
    %c1_15 = arith.constant 1 : index
    %44 = memref.load %arg1[%c2_14, %c1_15] : memref<5x8xf32, #tpu.memory_space<smem>>
    %45 = vector.broadcast %44 : f32 to vector<8x128xf32>
    %46 = arith.mulf %10, %45 : vector<8x128xf32>
    %47 = arith.addf %43, %46 : vector<8x128xf32>
    %c3_16 = arith.constant 3 : index
    %c1_17 = arith.constant 1 : index
    %48 = memref.load %arg1[%c3_16, %c1_17] : memref<5x8xf32, #tpu.memory_space<smem>>
    %49 = vector.broadcast %48 : f32 to vector<8x128xf32>
    %50 = arith.mulf %13, %49 : vector<8x128xf32>
    %51 = arith.addf %47, %50 : vector<8x128xf32>
    %c1_18 = arith.constant 1 : index
    %c0_19 = arith.constant 0 : index
    %c0_20 = arith.constant 0 : index
    %52 = vector.load %arg3[%c1_18, %c0_19, %c0_20] : memref<8x8x128xf32, #tpu.memory_space<vmem>>, vector<1x8x128xf32>
    %53 = vector.shape_cast %52 : vector<1x8x128xf32> to vector<8x128xf32>
    %54 = vector.shape_cast %51 : vector<8x128xf32> to vector<1x8x128xf32>
    tpu.vector_store %arg3[%c1_18, %c0_19, %c0_20], %54 {strides = array<i32>} : memref<8x8x128xf32, #tpu.memory_space<vmem>>, vector<1x8x128xf32>,
    %c0_21 = arith.constant 0 : index
    %c2_22 = arith.constant 2 : index
    %55 = memref.load %arg1[%c0_21, %c2_22] : memref<5x8xf32, #tpu.memory_space<smem>>
    %56 = vector.broadcast %55 : f32 to vector<8x128xf32>
    %57 = arith.mulf %4, %56 : vector<8x128xf32>
    %58 = arith.addf %16, %57 : vector<8x128xf32>
    %c1_23 = arith.constant 1 : index
    %c2_24 = arith.constant 2 : index
    %59 = memref.load %arg1[%c1_23, %c2_24] : memref<5x8xf32, #tpu.memory_space<smem>>
    %60 = vector.broadcast %59 : f32 to vector<8x128xf32>
    %61 = arith.mulf %7, %60 : vector<8x128xf32>
    %62 = arith.addf %58, %61 : vector<8x128xf32>
    %c2_25 = arith.constant 2 : index
    %c2_26 = arith.constant 2 : index
    %63 = memref.load %arg1[%c2_25, %c2_26] : memref<5x8xf32, #tpu.memory_space<smem>>
    %64 = vector.broadcast %63 : f32 to vector<8x128xf32>
    %65 = arith.mulf %10, %64 : vector<8x128xf32>
    %66 = arith.addf %62, %65 : vector<8x128xf32>
    %c3_27 = arith.constant 3 : index
    %c2_28 = arith.constant 2 : index
    %67 = memref.load %arg1[%c3_27, %c2_28] : memref<5x8xf32, #tpu.memory_space<smem>>
    %68 = vector.broadcast %67 : f32 to vector<8x128xf32>
    %69 = arith.mulf %13, %68 : vector<8x128xf32>
    %70 = arith.addf %66, %69 : vector<8x128xf32>
    %c2_29 = arith.constant 2 : index
    %c0_30 = arith.constant 0 : index
    %c0_31 = arith.constant 0 : index
    %71 = vector.load %arg3[%c2_29, %c0_30, %c0_31] : memref<8x8x128xf32, #tpu.memory_space<vmem>>, vector<1x8x128xf32>
    %72 = vector.shape_cast %71 : vector<1x8x128xf32> to vector<8x128xf32>
    %73 = vector.shape_cast %70 : vector<8x128xf32> to vector<1x8x128xf32>
    tpu.vector_store %arg3[%c2_29, %c0_30, %c0_31], %73 {strides = array<i32>} : memref<8x8x128xf32, #tpu.memory_space<vmem>>, vector<1x8x128xf32>,
    %c0_32 = arith.constant 0 : index
    %c3_33 = arith.constant 3 : index
    %74 = memref.load %arg1[%c0_32, %c3_33] : memref<5x8xf32, #tpu.memory_space<smem>>
    %75 = vector.broadcast %74 : f32 to vector<8x128xf32>
    %76 = arith.mulf %4, %75 : vector<8x128xf32>
    %77 = arith.addf %16, %76 : vector<8x128xf32>
    %c1_34 = arith.constant 1 : index
    %c3_35 = arith.constant 3 : index
    %78 = memref.load %arg1[%c1_34, %c3_35] : memref<5x8xf32, #tpu.memory_space<smem>>
    %79 = vector.broadcast %78 : f32 to vector<8x128xf32>
    %80 = arith.mulf %7, %79 : vector<8x128xf32>
    %81 = arith.addf %77, %80 : vector<8x128xf32>
    %c2_36 = arith.constant 2 : index
    %c3_37 = arith.constant 3 : index
    %82 = memref.load %arg1[%c2_36, %c3_37] : memref<5x8xf32, #tpu.memory_space<smem>>
    %83 = vector.broadcast %82 : f32 to vector<8x128xf32>
    %84 = arith.mulf %10, %83 : vector<8x128xf32>
    %85 = arith.addf %81, %84 : vector<8x128xf32>
    %c3_38 = arith.constant 3 : index
    %c3_39 = arith.constant 3 : index
    %86 = memref.load %arg1[%c3_38, %c3_39] : memref<5x8xf32, #tpu.memory_space<smem>>
    %87 = vector.broadcast %86 : f32 to vector<8x128xf32>
    %88 = arith.mulf %13, %87 : vector<8x128xf32>
    %89 = arith.addf %85, %88 : vector<8x128xf32>
    %c3_40 = arith.constant 3 : index
    %c0_41 = arith.constant 0 : index
    %c0_42 = arith.constant 0 : index
    %90 = vector.load %arg3[%c3_40, %c0_41, %c0_42] : memref<8x8x128xf32, #tpu.memory_space<vmem>>, vector<1x8x128xf32>
    %91 = vector.shape_cast %90 : vector<1x8x128xf32> to vector<8x128xf32>
    %92 = vector.shape_cast %89 : vector<8x128xf32> to vector<1x8x128xf32>
    tpu.vector_store %arg3[%c3_40, %c0_41, %c0_42], %92 {strides = array<i32>} : memref<8x8x128xf32, #tpu.memory_space<vmem>>, vector<1x8x128xf32>,
    %c0_43 = arith.constant 0 : index
    %c4_44 = arith.constant 4 : index
    %93 = memref.load %arg1[%c0_43, %c4_44] : memref<5x8xf32, #tpu.memory_space<smem>>
    %94 = vector.broadcast %93 : f32 to vector<8x128xf32>
    %95 = arith.mulf %4, %94 : vector<8x128xf32>
    %96 = arith.addf %16, %95 : vector<8x128xf32>
    %c1_45 = arith.constant 1 : index
    %c4_46 = arith.constant 4 : index
    %97 = memref.load %arg1[%c1_45, %c4_46] : memref<5x8xf32, #tpu.memory_space<smem>>
    %98 = vector.broadcast %97 : f32 to vector<8x128xf32>
    %99 = arith.mulf %7, %98 : vector<8x128xf32>
    %100 = arith.addf %96, %99 : vector<8x128xf32>
    %c2_47 = arith.constant 2 : index
    %c4_48 = arith.constant 4 : index
    %101 = memref.load %arg1[%c2_47, %c4_48] : memref<5x8xf32, #tpu.memory_space<smem>>
    %102 = vector.broadcast %101 : f32 to vector<8x128xf32>
    %103 = arith.mulf %10, %102 : vector<8x128xf32>
    %104 = arith.addf %100, %103 : vector<8x128xf32>
    %c3_49 = arith.constant 3 : index
    %c4_50 = arith.constant 4 : index
    %105 = memref.load %arg1[%c3_49, %c4_50] : memref<5x8xf32, #tpu.memory_space<smem>>
    %106 = vector.broadcast %105 : f32 to vector<8x128xf32>
    %107 = arith.mulf %13, %106 : vector<8x128xf32>
    %108 = arith.addf %104, %107 : vector<8x128xf32>
    %c4_51 = arith.constant 4 : index
    %c0_52 = arith.constant 0 : index
    %c0_53 = arith.constant 0 : index
    %109 = vector.load %arg3[%c4_51, %c0_52, %c0_53] : memref<8x8x128xf32, #tpu.memory_space<vmem>>, vector<1x8x128xf32>
    %110 = vector.shape_cast %109 : vector<1x8x128xf32> to vector<8x128xf32>
    %111 = vector.shape_cast %108 : vector<8x128xf32> to vector<1x8x128xf32>
    tpu.vector_store %arg3[%c4_51, %c0_52, %c0_53], %111 {strides = array<i32>} : memref<8x8x128xf32, #tpu.memory_space<vmem>>, vector<1x8x128xf32>,
    %c0_54 = arith.constant 0 : index
    %c5 = arith.constant 5 : index
    %112 = memref.load %arg1[%c0_54, %c5] : memref<5x8xf32, #tpu.memory_space<smem>>
    %113 = vector.broadcast %112 : f32 to vector<8x128xf32>
    %114 = arith.mulf %4, %113 : vector<8x128xf32>
    %115 = arith.addf %16, %114 : vector<8x128xf32>
    %c1_55 = arith.constant 1 : index
    %c5_56 = arith.constant 5 : index
    %116 = memref.load %arg1[%c1_55, %c5_56] : memref<5x8xf32, #tpu.memory_space<smem>>
    %117 = vector.broadcast %116 : f32 to vector<8x128xf32>
    %118 = arith.mulf %7, %117 : vector<8x128xf32>
    %119 = arith.addf %115, %118 : vector<8x128xf32>
    %c2_57 = arith.constant 2 : index
    %c5_58 = arith.constant 5 : index
    %120 = memref.load %arg1[%c2_57, %c5_58] : memref<5x8xf32, #tpu.memory_space<smem>>
    %121 = vector.broadcast %120 : f32 to vector<8x128xf32>
    %122 = arith.mulf %10, %121 : vector<8x128xf32>
    %123 = arith.addf %119, %122 : vector<8x128xf32>
    %c3_59 = arith.constant 3 : index
    %c5_60 = arith.constant 5 : index
    %124 = memref.load %arg1[%c3_59, %c5_60] : memref<5x8xf32, #tpu.memory_space<smem>>
    %125 = vector.broadcast %124 : f32 to vector<8x128xf32>
    %126 = arith.mulf %13, %125 : vector<8x128xf32>
    %127 = arith.addf %123, %126 : vector<8x128xf32>
    %c5_61 = arith.constant 5 : index
    %c0_62 = arith.constant 0 : index
    %c0_63 = arith.constant 0 : index
    %128 = vector.load %arg3[%c5_61, %c0_62, %c0_63] : memref<8x8x128xf32, #tpu.memory_space<vmem>>, vector<1x8x128xf32>
    %129 = vector.shape_cast %128 : vector<1x8x128xf32> to vector<8x128xf32>
    %130 = vector.shape_cast %127 : vector<8x128xf32> to vector<1x8x128xf32>
    tpu.vector_store %arg3[%c5_61, %c0_62, %c0_63], %130 {strides = array<i32>} : memref<8x8x128xf32, #tpu.memory_space<vmem>>, vector<1x8x128xf32>,
    %c0_64 = arith.constant 0 : index
    %c6 = arith.constant 6 : index
    %131 = memref.load %arg1[%c0_64, %c6] : memref<5x8xf32, #tpu.memory_space<smem>>
    %132 = vector.broadcast %131 : f32 to vector<8x128xf32>
    %133 = arith.mulf %4, %132 : vector<8x128xf32>
    %134 = arith.addf %16, %133 : vector<8x128xf32>
    %c1_65 = arith.constant 1 : index
    %c6_66 = arith.constant 6 : index
    %135 = memref.load %arg1[%c1_65, %c6_66] : memref<5x8xf32, #tpu.memory_space<smem>>
    %136 = vector.broadcast %135 : f32 to vector<8x128xf32>
    %137 = arith.mulf %7, %136 : vector<8x128xf32>
    %138 = arith.addf %134, %137 : vector<8x128xf32>
    %c2_67 = arith.constant 2 : index
    %c6_68 = arith.constant 6 : index
    %139 = memref.load %arg1[%c2_67, %c6_68] : memref<5x8xf32, #tpu.memory_space<smem>>
    %140 = vector.broadcast %139 : f32 to vector<8x128xf32>
    %141 = arith.mulf %10, %140 : vector<8x128xf32>
    %142 = arith.addf %138, %141 : vector<8x128xf32>
    %c3_69 = arith.constant 3 : index
    %c6_70 = arith.constant 6 : index
    %143 = memref.load %arg1[%c3_69, %c6_70] : memref<5x8xf32, #tpu.memory_space<smem>>
    %144 = vector.broadcast %143 : f32 to vector<8x128xf32>
    %145 = arith.mulf %13, %144 : vector<8x128xf32>
    %146 = arith.addf %142, %145 : vector<8x128xf32>
    %c6_71 = arith.constant 6 : index
    %c0_72 = arith.constant 0 : index
    %c0_73 = arith.constant 0 : index
    %147 = vector.load %arg3[%c6_71, %c0_72, %c0_73] : memref<8x8x128xf32, #tpu.memory_space<vmem>>, vector<1x8x128xf32>
    %148 = vector.shape_cast %147 : vector<1x8x128xf32> to vector<8x128xf32>
    %149 = vector.shape_cast %146 : vector<8x128xf32> to vector<1x8x128xf32>
    tpu.vector_store %arg3[%c6_71, %c0_72, %c0_73], %149 {strides = array<i32>} : memref<8x8x128xf32, #tpu.memory_space<vmem>>, vector<1x8x128xf32>,
    %c0_74 = arith.constant 0 : index
    %c7 = arith.constant 7 : index
    %150 = memref.load %arg1[%c0_74, %c7] : memref<5x8xf32, #tpu.memory_space<smem>>
    %151 = vector.broadcast %150 : f32 to vector<8x128xf32>
    %152 = arith.mulf %4, %151 : vector<8x128xf32>
    %153 = arith.addf %16, %152 : vector<8x128xf32>
    %c1_75 = arith.constant 1 : index
    %c7_76 = arith.constant 7 : index
    %154 = memref.load %arg1[%c1_75, %c7_76] : memref<5x8xf32, #tpu.memory_space<smem>>
    %155 = vector.broadcast %154 : f32 to vector<8x128xf32>
    %156 = arith.mulf %7, %155 : vector<8x128xf32>
    %157 = arith.addf %153, %156 : vector<8x128xf32>
    %c2_77 = arith.constant 2 : index
    %c7_78 = arith.constant 7 : index
    %158 = memref.load %arg1[%c2_77, %c7_78] : memref<5x8xf32, #tpu.memory_space<smem>>
    %159 = vector.broadcast %158 : f32 to vector<8x128xf32>
    %160 = arith.mulf %10, %159 : vector<8x128xf32>
    %161 = arith.addf %157, %160 : vector<8x128xf32>
    %c3_79 = arith.constant 3 : index
    %c7_80 = arith.constant 7 : index
    %162 = memref.load %arg1[%c3_79, %c7_80] : memref<5x8xf32, #tpu.memory_space<smem>>
    %163 = vector.broadcast %162 : f32 to vector<8x128xf32>
    %164 = arith.mulf %13, %163 : vector<8x128xf32>
    %165 = arith.addf %161, %164 : vector<8x128xf32>
    %c7_81 = arith.constant 7 : index
    %c0_82 = arith.constant 0 : index
    %c0_83 = arith.constant 0 : index
    %166 = vector.load %arg3[%c7_81, %c0_82, %c0_83] : memref<8x8x128xf32, #tpu.memory_space<vmem>>, vector<1x8x128xf32>
    %167 = vector.shape_cast %166 : vector<1x8x128xf32> to vector<8x128xf32>
    %168 = vector.shape_cast %165 : vector<8x128xf32> to vector<1x8x128xf32>
    tpu.vector_store %arg3[%c7_81, %c0_82, %c0_83], %168 {strides = array<i32>} : memref<8x8x128xf32, #tpu.memory_space<vmem>>, vector<1x8x128xf32>,
    return
  }
  func.func @transform_0(%arg0: i32) -> (i32, i32) {
    %c0_i32 = arith.constant 0 : i32
    %c0_i32_0 = arith.constant 0 : i32
    %c0_i32_1 = arith.constant 0 : i32
    return %c0_i32, %c0_i32_0 : i32, i32
  }
  func.func @transform_1(%arg0: i32) -> (i32, i32) {
    %c0_i32 = arith.constant 0 : i32
    %c0_i32_0 = arith.constant 0 : i32
    return %arg0, %c0_i32 : i32, i32
  }
  func.func @transform_2(%arg0: i32) -> (i32, i32, i32) {
    %c0_i32 = arith.constant 0 : i32
    %c0_i32_0 = arith.constant 0 : i32
    %c0_i32_1 = arith.constant 0 : i32
    return %c0_i32, %arg0, %c0_i32_0 : i32, i32, i32
  }
}

</mosaic_0001>

<llo_original>
// kernel: tpu_custom_call.1
$region0: #{tpu_custom_call.1}
  #allocation0 [shape = 'u32[]', space=smem, size = 0x4, offset = 0x4, fixed_abs, tag = 'smem constant byte address 0x4 - core index']
  #allocation1 [shape = 'u32[144,128]{1,0:T(1,128)}', space=vmem, size = 0x12000, scoped, tag = 'internal scratch']
  %s0 = inlined_call_operand.hbm [shape: f32[5,8], index: 0, kind: input, shape index: {}]
  %s1 = inlined_call_operand.hbm [shape: f32[8,136], index: 1, kind: input, shape index: {}]
  %s2 = inlined_call_operand.hbm [shape: f32[8,8,128], index: 2, kind: output, shape index: {}]
  %s3 = sld [smem:[#allocation0]]
  $region26: #{tpu_custom_call.1} parent=0
    _
  %s5 = ssub.s32 1, %s3
  %s6 = scalar_select 0, %s5, %s3
  $region1: #{tpu_custom_call.1} parent=0
    #allocation2 [shape = 'u8[4096]{0}', space=smem, size = 0x1000, scoped, tag = 'input window, operand 0, single buffered']
    #allocation3 [shape = 's32[1]{0}', space=sflag, size = 0x4, scoped, tag = 'scoped memory for tpu_custom_call.1']
    #allocation4 [shape = 's32[1]{0}', space=sflag, size = 0x4, scoped, tag = 'scoped memory for tpu_custom_call.1']
    #allocation5 [shape = 's32[1]{0}', space=sflag, size = 0x4, scoped, tag = 'scoped memory for tpu_custom_call.1']
    #allocation6 [shape = 'u8[8192]{0}', space=vmem, size = 0x2000, scoped, tag = 'input window, operand 1, single buffered']
    #allocation7 [shape = 'u8[32768]{0}', space=vmem, size = 0x8000, scoped, tag = 'output window, operand 0, single buffered']
    %7 = vsyncpa [#allocation5], 0
    %8 = vsyncpa [#allocation3], 0
    %9 = vsyncpa [#allocation4], 0
    // Predicated region
    $region2: #{tpu_custom_call.1} parent=1 // pred_check
      _
    $region3: #{tpu_custom_call.1} parent=1 // pred_check_branch
      %11 = sbr.rel (0) target = $region5
    $region4: #{tpu_custom_call.1} parent=1 // pred_region
      %s13 = ssub.s32 128, 128
      %14 = vsyncadd [#allocation5], %s13
      %17 = dma.hbm_to_smem %s0, 128, [#allocation2], [#allocation5]
    $region5: #{tpu_custom_call.1} parent=1 // pred_fallthru
      _
    // Predicated region
    $region6: #{tpu_custom_call.1} parent=1 // pred_check
      _
    $region7: #{tpu_custom_call.1} parent=1 // pred_check_branch
      %19 = sbr.rel (0) target = $region9
    $region8: #{tpu_custom_call.1} parent=1 // pred_region
      %s21 = ssub.s32 256, 256
      %22 = vsyncadd [#allocation3], %s21
      %s24 = sshll.u32 [#allocation6], 4
      %s25 = int_to_ptr.vmem [resolvable:$true] %s24
      %27 = dma.hbm_to_vmem [thread:$0]  %s1, 256, %s25, [#allocation3]
    $region9: #{tpu_custom_call.1} parent=1 // pred_fallthru
      _
    // Predicated region
    $region10: #{tpu_custom_call.1} parent=1 // pred_check
      _
    $region11: #{tpu_custom_call.1} parent=1 // pred_check_branch
      %29 = sbr.rel (0) target = $region13
    $region12: #{tpu_custom_call.1} parent=1 // pred_region
      %30 = dma.done [#allocation5], 128
    $region13: #{tpu_custom_call.1} parent=1 // pred_fallthru
      _
    // Predicated region
    $region14: #{tpu_custom_call.1} parent=1 // pred_check
      _
    $region15: #{tpu_custom_call.1} parent=1 // pred_check_branch
      %32 = sbr.rel (0) target = $region17
    $region16: #{tpu_custom_call.1} parent=1 // pred_region
      %33 = dma.done [#allocation3], 256
    $region17: #{tpu_custom_call.1} parent=1 // pred_fallthru
      _
    %34 = sfence
    %s35 = sld [smem:[#allocation2 + $0x200]]
    %v36 = vld [vmem:[#allocation6] sm:$0xff]
    %v37 = vld [vmem:[#allocation6 + $0x8] sm:$0xff]
    %40 = vrot.lane.b32.xlu0 %v36, 120
    %v41 = vpop.permute.xlu0 %40
    %42 = vrot.lane.b32.xlu0 %v37, 120
    %v43 = vpop.permute.xlu0 %42
    %vm44 = vcmask 982016
    %v45 = vsel %vm44, %v41, %v43
    %v47 = vadd.f32 %v36, %v45
    %48 = vrot.lane.b32.xlu0 %v36, 122
    %v49 = vpop.permute.xlu0 %48
    %50 = vrot.lane.b32.xlu0 %v37, 122
    %v51 = vpop.permute.xlu0 %50
    %vm52 = vcmask 998400
    %v53 = vsel %vm52, %v49, %v51
    %v56 = vadd.f32 %v36, %v53
    %v57 = vadd.f32 %v37, %v51
    %58 = vrot.lane.b32.xlu0 %v36, 124
    %v59 = vpop.permute.xlu0 %58
    %60 = vrot.lane.b32.xlu0 %v37, 124
    %v61 = vpop.permute.xlu0 %60
    %vm62 = vcmask 1014784
    %v63 = vsel %vm62, %v59, %v61
    %v66 = vadd.f32 %v36, %v63
    %v67 = vadd.f32 %v37, %v61
    %68 = vrot.lane.b32.xlu0 %v36, 126
    %v69 = vpop.permute.xlu0 %68
    %70 = vrot.lane.b32.xlu0 %v37, 126
    %v71 = vpop.permute.xlu0 %70
    %vm72 = vcmask 1031168
    %v73 = vsel %vm72, %v69, %v71
    %v76 = vadd.f32 %v36, %v73
    %v77 = vadd.f32 %v37, %v71
    %v78 = vstv %s35
    %v79 = vmul.f32 %v36, %v78
    %v80 = vmul.f32 %v37, %v78
    %s81 = sld [smem:[#allocation2]]
    %v82 = vstv %s81
    %v83 = vmul.f32 %v47, %v82
    %85 = vrot.lane.b32.xlu0 %v83, 4
    %v86 = vpop.permute.xlu0 %85
    %v88 = vadd.f32 %v79, %v86
    %v89 = vadd.f32 %v80, %v86
    %s90 = sld [smem:[#allocation2 + $0x80]]
    %v91 = vstv %s90
    %v92 = vmul.f32 %v56, %v91
    %v93 = vmul.f32 %v57, %v91
    %96 = vrot.lane.b32.xlu0 %v92, 3
    %v97 = vpop.permute.xlu0 %96
    %98 = vrot.lane.b32.xlu0 %v93, 3
    %v99 = vpop.permute.xlu0 %98
    %vm100 = vcmask 23552
    %v101 = vsel %vm100, %v97, %v99
    %v104 = vadd.f32 %v88, %v97
    %v105 = vadd.f32 %v89, %v101
    %s106 = sld [smem:[#allocation2 + $0x100]]
    %v107 = vstv %s106
    %v108 = vmul.f32 %v66, %v107
    %v109 = vmul.f32 %v67, %v107
    %112 = vrot.lane.b32.xlu0 %v108, 2
    %v113 = vpop.permute.xlu0 %112
    %114 = vrot.lane.b32.xlu0 %v109, 2
    %v115 = vpop.permute.xlu0 %114
    %vm116 = vcmask 15360
    %v117 = vsel %vm116, %v113, %v115
    %v120 = vadd.f32 %v104, %v113
    %v121 = vadd.f32 %v105, %v117
    %s122 = sld [smem:[#allocation2 + $0x180]]
    %v123 = vstv %s122
    %v124 = vmul.f32 %v76, %v123
    %v125 = vmul.f32 %v77, %v123
    %128 = vrot.lane.b32.xlu0 %v124, 1
    %v129 = vpop.permute.xlu0 %128
    %130 = vrot.lane.b32.xlu0 %v125, 1
    %v131 = vpop.permute.xlu0 %130
    %vm132 = vcmask 7168
    %v133 = vsel %vm132, %v129, %v131
    %v136 = vadd.f32 %v120, %v129
    %v137 = vadd.f32 %v121, %v133
    %140 = vrot.lane.b32.xlu0 %v136, 124
    %v141 = vpop.permute.xlu0 %140
    %142 = vrot.lane.b32.xlu0 %v137, 124
    %v143 = vpop.permute.xlu0 %142
    %v144 = vsel %vm62, %v141, %v143
    %146 = vst [vmem:[#allocation7] sm:$0xff] %v144
    %s147 = sld [smem:[#allocation2 + $0x1]]
    %v148 = vstv %s147
    %v149 = vmul.f32 %v47, %v148
    %151 = vrot.lane.b32.xlu0 %v149, 4
    %v152 = vpop.permute.xlu0 %151
    %v154 = vadd.f32 %v79, %v152
    %v155 = vadd.f32 %v80, %v152
    %s156 = sld [smem:[#allocation2 + $0x81]]
    %v157 = vstv %s156
    %v158 = vmul.f32 %v56, %v157
    %v159 = vmul.f32 %v57, %v157
    %162 = vrot.lane.b32.xlu0 %v158, 3
    %v163 = vpop.permute.xlu0 %162
    %164 = vrot.lane.b32.xlu0 %v159, 3
    %v165 = vpop.permute.xlu0 %164
    %v166 = vsel %vm100, %v163, %v165
    %v169 = vadd.f32 %v154, %v163
    %v170 = vadd.f32 %v155, %v166
    %s171 = sld [smem:[#allocation2 + $0x101]]
    %v172 = vstv %s171
    %v173 = vmul.f32 %v66, %v172
    %v174 = vmul.f32 %v67, %v172
    %177 = vrot.lane.b32.xlu0 %v173, 2
    %v178 = vpop.permute.xlu0 %177
    %179 = vrot.lane.b32.xlu0 %v174, 2
    %v180 = vpop.permute.xlu0 %179
    %v181 = vsel %vm116, %v178, %v180
    %v184 = vadd.f32 %v169, %v178
    %v185 = vadd.f32 %v170, %v181
    %s186 = sld [smem:[#allocation2 + $0x181]]
    %v187 = vstv %s186
    %v188 = vmul.f32 %v76, %v187
    %v189 = vmul.f32 %v77, %v187
    %192 = vrot.lane.b32.xlu0 %v188, 1
    %v193 = vpop.permute.xlu0 %192
    %194 = vrot.lane.b32.xlu0 %v189, 1
    %v195 = vpop.permute.xlu0 %194
    %v196 = vsel %vm132, %v193, %v195
    %v199 = vadd.f32 %v184, %v193
    %v200 = vadd.f32 %v185, %v196
    %203 = vrot.lane.b32.xlu0 %v199, 124
    %v204 = vpop.permute.xlu0 %203
    %205 = vrot.lane.b32.xlu0 %v200, 124
    %v206 = vpop.permute.xlu0 %205
    %v207 = vsel %vm62, %v204, %v206
    %s209 = scalar_lea.vmem [#allocation7], 8
    %210 = vst [vmem:[%s209] sm:$0xff] %v207
    %s211 = sld [smem:[#allocation2 + $0x2]]
    %v212 = vstv %s211
    %v213 = vmul.f32 %v47, %v212
    %215 = vrot.lane.b32.xlu0 %v213, 4
    %v216 = vpop.permute.xlu0 %215
    %v218 = vadd.f32 %v79, %v216
    %v219 = vadd.f32 %v80, %v216
    %s220 = sld [smem:[#allocation2 + $0x82]]
    %v221 = vstv %s220
    %v222 = vmul.f32 %v56, %v221
    %v223 = vmul.f32 %v57, %v221
    %226 = vrot.lane.b32.xlu0 %v222, 3
    %v227 = vpop.permute.xlu0 %226
    %228 = vrot.lane.b32.xlu0 %v223, 3
    %v229 = vpop.permute.xlu0 %228
    %v230 = vsel %vm100, %v227, %v229
    %v233 = vadd.f32 %v218, %v227
    %v234 = vadd.f32 %v219, %v230
    %s235 = sld [smem:[#allocation2 + $0x102]]
    %v236 = vstv %s235
    %v237 = vmul.f32 %v66, %v236
    %v238 = vmul.f32 %v67, %v236
    %241 = vrot.lane.b32.xlu0 %v237, 2
    %v242 = vpop.permute.xlu0 %241
    %243 = vrot.lane.b32.xlu0 %v238, 2
    %v244 = vpop.permute.xlu0 %243
    %v245 = vsel %vm116, %v242, %v244
    %v248 = vadd.f32 %v233, %v242
    %v249 = vadd.f32 %v234, %v245
    %s250 = sld [smem:[#allocation2 + $0x182]]
    %v251 = vstv %s250
    %v252 = vmul.f32 %v76, %v251
    %v253 = vmul.f32 %v77, %v251
    %256 = vrot.lane.b32.xlu0 %v252, 1
    %v257 = vpop.permute.xlu0 %256
    %258 = vrot.lane.b32.xlu0 %v253, 1
    %v259 = vpop.permute.xlu0 %258
    %v260 = vsel %vm132, %v257, %v259
    %v263 = vadd.f32 %v248, %v257
    %v264 = vadd.f32 %v249, %v260
    %267 = vrot.lane.b32.xlu0 %v263, 124
    %v268 = vpop.permute.xlu0 %267
    %269 = vrot.lane.b32.xlu0 %v264, 124
    %v270 = vpop.permute.xlu0 %269
    %v271 = vsel %vm62, %v268, %v270
    %s273 = scalar_lea.vmem [#allocation7], 16
    %274 = vst [vmem:[%s273] sm:$0xff] %v271
    %s275 = sld [smem:[#allocation2 + $0x3]]
    %v276 = vstv %s275
    %v277 = vmul.f32 %v47, %v276
    %279 = vrot.lane.b32.xlu0 %v277, 4
    %v280 = vpop.permute.xlu0 %279
    %v282 = vadd.f32 %v79, %v280
    %v283 = vadd.f32 %v80, %v280
    %s284 = sld [smem:[#allocation2 + $0x83]]
    %v285 = vstv %s284
    %v286 = vmul.f32 %v56, %v285
    %v287 = vmul.f32 %v57, %v285
    %290 = vrot.lane.b32.xlu0 %v286, 3
    %v291 = vpop.permute.xlu0 %290
    %292 = vrot.lane.b32.xlu0 %v287, 3
    %v293 = vpop.permute.xlu0 %292
    %v294 = vsel %vm100, %v291, %v293
    %v297 = vadd.f32 %v282, %v291
    %v298 = vadd.f32 %v283, %v294
    %s299 = sld [smem:[#allocation2 + $0x103]]
    %v300 = vstv %s299
    %v301 = vmul.f32 %v66, %v300
    %v302 = vmul.f32 %v67, %v300
    %305 = vrot.lane.b32.xlu0 %v301, 2
    %v306 = vpop.permute.xlu0 %305
    %307 = vrot.lane.b32.xlu0 %v302, 2
    %v308 = vpop.permute.xlu0 %307
    %v309 = vsel %vm116, %v306, %v308
    %v312 = vadd.f32 %v297, %v306
    %v313 = vadd.f32 %v298, %v309
    %s314 = sld [smem:[#allocation2 + $0x183]]
    %v315 = vstv %s314
    %v316 = vmul.f32 %v76, %v315
    %v317 = vmul.f32 %v77, %v315
    %320 = vrot.lane.b32.xlu0 %v316, 1
    %v321 = vpop.permute.xlu0 %320
    %322 = vrot.lane.b32.xlu0 %v317, 1
    %v323 = vpop.permute.xlu0 %322
    %v324 = vsel %vm132, %v321, %v323
    %v327 = vadd.f32 %v312, %v321
    %v328 = vadd.f32 %v313, %v324
    %331 = vrot.lane.b32.xlu0 %v327, 124
    %v332 = vpop.permute.xlu0 %331
    %333 = vrot.lane.b32.xlu0 %v328, 124
    %v334 = vpop.permute.xlu0 %333
    %v335 = vsel %vm62, %v332, %v334
    %s337 = scalar_lea.vmem [#allocation7], 24
    %338 = vst [vmem:[%s337] sm:$0xff] %v335
    %s339 = sld [smem:[#allocation2 + $0x4]]
    %v340 = vstv %s339
    %v341 = vmul.f32 %v47, %v340
    %343 = vrot.lane.b32.xlu0 %v341, 4
    %v344 = vpop.permute.xlu0 %343
    %v346 = vadd.f32 %v79, %v344
    %v347 = vadd.f32 %v80, %v344
    %s348 = sld [smem:[#allocation2 + $0x84]]
    %v349 = vstv %s348
    %v350 = vmul.f32 %v56, %v349
    %v351 = vmul.f32 %v57, %v349
    %354 = vrot.lane.b32.xlu0 %v350, 3
    %v355 = vpop.permute.xlu0 %354
    %356 = vrot.lane.b32.xlu0 %v351, 3
    %v357 = vpop.permute.xlu0 %356
    %v358 = vsel %vm100, %v355, %v357
    %v361 = vadd.f32 %v346, %v355
    %v362 = vadd.f32 %v347, %v358
    %s363 = sld [smem:[#allocation2 + $0x104]]
    %v364 = vstv %s363
    %v365 = vmul.f32 %v66, %v364
    %v366 = vmul.f32 %v67, %v364
    %369 = vrot.lane.b32.xlu0 %v365, 2
    %v370 = vpop.permute.xlu0 %369
    %371 = vrot.lane.b32.xlu0 %v366, 2
    %v372 = vpop.permute.xlu0 %371
    %v373 = vsel %vm116, %v370, %v372
    %v376 = vadd.f32 %v361, %v370
    %v377 = vadd.f32 %v362, %v373
    %s378 = sld [smem:[#allocation2 + $0x184]]
    %v379 = vstv %s378
    %v380 = vmul.f32 %v76, %v379
    %v381 = vmul.f32 %v77, %v379
    %384 = vrot.lane.b32.xlu0 %v380, 1
    %v385 = vpop.permute.xlu0 %384
    %386 = vrot.lane.b32.xlu0 %v381, 1
    %v387 = vpop.permute.xlu0 %386
    %v388 = vsel %vm132, %v385, %v387
    %v391 = vadd.f32 %v376, %v385
    %v392 = vadd.f32 %v377, %v388
    %395 = vrot.lane.b32.xlu0 %v391, 124
    %v396 = vpop.permute.xlu0 %395
    %397 = vrot.lane.b32.xlu0 %v392, 124
    %v398 = vpop.permute.xlu0 %397
    %v399 = vsel %vm62, %v396, %v398
    %s401 = scalar_lea.vmem [#allocation7], 32
    %402 = vst [vmem:[%s401] sm:$0xff] %v399
    %s403 = sld [smem:[#allocation2 + $0x5]]
    %v404 = vstv %s403
    %v405 = vmul.f32 %v47, %v404
    %407 = vrot.lane.b32.xlu0 %v405, 4
    %v408 = vpop.permute.xlu0 %407
    %v410 = vadd.f32 %v79, %v408
    %v411 = vadd.f32 %v80, %v408
    %s412 = sld [smem:[#allocation2 + $0x85]]
    %v413 = vstv %s412
    %v414 = vmul.f32 %v56, %v413
    %v415 = vmul.f32 %v57, %v413
    %418 = vrot.lane.b32.xlu0 %v414, 3
    %v419 = vpop.permute.xlu0 %418
    %420 = vrot.lane.b32.xlu0 %v415, 3
    %v421 = vpop.permute.xlu0 %420
    %v422 = vsel %vm100, %v419, %v421
    %v425 = vadd.f32 %v410, %v419
    %v426 = vadd.f32 %v411, %v422
    %s427 = sld [smem:[#allocation2 + $0x105]]
    %v428 = vstv %s427
    %v429 = vmul.f32 %v66, %v428
    %v430 = vmul.f32 %v67, %v428
    %433 = vrot.lane.b32.xlu0 %v429, 2
    %v434 = vpop.permute.xlu0 %433
    %435 = vrot.lane.b32.xlu0 %v430, 2
    %v436 = vpop.permute.xlu0 %435
    %v437 = vsel %vm116, %v434, %v436
    %v440 = vadd.f32 %v425, %v434
    %v441 = vadd.f32 %v426, %v437
    %s442 = sld [smem:[#allocation2 + $0x185]]
    %v443 = vstv %s442
    %v444 = vmul.f32 %v76, %v443
    %v445 = vmul.f32 %v77, %v443
    %448 = vrot.lane.b32.xlu0 %v444, 1
    %v449 = vpop.permute.xlu0 %448
    %450 = vrot.lane.b32.xlu0 %v445, 1
    %v451 = vpop.permute.xlu0 %450
    %v452 = vsel %vm132, %v449, %v451
    %v455 = vadd.f32 %v440, %v449
    %v456 = vadd.f32 %v441, %v452
    %459 = vrot.lane.b32.xlu0 %v455, 124
    %v460 = vpop.permute.xlu0 %459
    %461 = vrot.lane.b32.xlu0 %v456, 124
    %v462 = vpop.permute.xlu0 %461
    %v463 = vsel %vm62, %v460, %v462
    %s465 = scalar_lea.vmem [#allocation7], 40
    %466 = vst [vmem:[%s465] sm:$0xff] %v463
    %s467 = sld [smem:[#allocation2 + $0x6]]
    %v468 = vstv %s467
    %v469 = vmul.f32 %v47, %v468
    %471 = vrot.lane.b32.xlu0 %v469, 4
    %v472 = vpop.permute.xlu0 %471
    %v474 = vadd.f32 %v79, %v472
    %v475 = vadd.f32 %v80, %v472
    %s476 = sld [smem:[#allocation2 + $0x86]]
    %v477 = vstv %s476
    %v478 = vmul.f32 %v56, %v477
    %v479 = vmul.f32 %v57, %v477
    %482 = vrot.lane.b32.xlu0 %v478, 3
    %v483 = vpop.permute.xlu0 %482
    %484 = vrot.lane.b32.xlu0 %v479, 3
    %v485 = vpop.permute.xlu0 %484
    %v486 = vsel %vm100, %v483, %v485
    %v489 = vadd.f32 %v474, %v483
    %v490 = vadd.f32 %v475, %v486
    %s491 = sld [smem:[#allocation2 + $0x106]]
    %v492 = vstv %s491
    %v493 = vmul.f32 %v66, %v492
    %v494 = vmul.f32 %v67, %v492
    %497 = vrot.lane.b32.xlu0 %v493, 2
    %v498 = vpop.permute.xlu0 %497
    %499 = vrot.lane.b32.xlu0 %v494, 2
    %v500 = vpop.permute.xlu0 %499
    %v501 = vsel %vm116, %v498, %v500
    %v504 = vadd.f32 %v489, %v498
    %v505 = vadd.f32 %v490, %v501
    %s506 = sld [smem:[#allocation2 + $0x186]]
    %v507 = vstv %s506
    %v508 = vmul.f32 %v76, %v507
    %v509 = vmul.f32 %v77, %v507
    %512 = vrot.lane.b32.xlu0 %v508, 1
    %v513 = vpop.permute.xlu0 %512
    %514 = vrot.lane.b32.xlu0 %v509, 1
    %v515 = vpop.permute.xlu0 %514
    %v516 = vsel %vm132, %v513, %v515
    %v519 = vadd.f32 %v504, %v513
    %v520 = vadd.f32 %v505, %v516
    %523 = vrot.lane.b32.xlu0 %v519, 124
    %v524 = vpop.permute.xlu0 %523
    %525 = vrot.lane.b32.xlu0 %v520, 124
    %v526 = vpop.permute.xlu0 %525
    %v527 = vsel %vm62, %v524, %v526
    %s529 = scalar_lea.vmem [#allocation7], 48
    %530 = vst [vmem:[%s529] sm:$0xff] %v527
    %s531 = sld [smem:[#allocation2 + $0x7]]
    %v532 = vstv %s531
    %v533 = vmul.f32 %v47, %v532
    %535 = vrot.lane.b32.xlu0 %v533, 4
    %v536 = vpop.permute.xlu0 %535
    %v538 = vadd.f32 %v79, %v536
    %v539 = vadd.f32 %v80, %v536
    %s540 = sld [smem:[#allocation2 + $0x87]]
    %v541 = vstv %s540
    %v542 = vmul.f32 %v56, %v541
    %v543 = vmul.f32 %v57, %v541
    %546 = vrot.lane.b32.xlu0 %v542, 3
    %v547 = vpop.permute.xlu0 %546
    %548 = vrot.lane.b32.xlu0 %v543, 3
    %v549 = vpop.permute.xlu0 %548
    %v550 = vsel %vm100, %v547, %v549
    %v553 = vadd.f32 %v538, %v547
    %v554 = vadd.f32 %v539, %v550
    %s555 = sld [smem:[#allocation2 + $0x107]]
    %v556 = vstv %s555
    %v557 = vmul.f32 %v66, %v556
    %v558 = vmul.f32 %v67, %v556
    %561 = vrot.lane.b32.xlu0 %v557, 2
    %v562 = vpop.permute.xlu0 %561
    %563 = vrot.lane.b32.xlu0 %v558, 2
    %v564 = vpop.permute.xlu0 %563
    %v565 = vsel %vm116, %v562, %v564
    %v568 = vadd.f32 %v553, %v562
    %v569 = vadd.f32 %v554, %v565
    %s570 = sld [smem:[#allocation2 + $0x187]]
    %v571 = vstv %s570
    %v572 = vmul.f32 %v76, %v571
    %v573 = vmul.f32 %v77, %v571
    %576 = vrot.lane.b32.xlu0 %v572, 1
    %v577 = vpop.permute.xlu0 %576
    %578 = vrot.lane.b32.xlu0 %v573, 1
    %v579 = vpop.permute.xlu0 %578
    %v580 = vsel %vm132, %v577, %v579
    %v583 = vadd.f32 %v568, %v577
    %v584 = vadd.f32 %v569, %v580
    %587 = vrot.lane.b32.xlu0 %v583, 124
    %v588 = vpop.permute.xlu0 %587
    %589 = vrot.lane.b32.xlu0 %v584, 124
    %v590 = vpop.permute.xlu0 %589
    %v591 = vsel %vm62, %v588, %v590
    %s593 = scalar_lea.vmem [#allocation7], 56
    %594 = vst [vmem:[%s593] sm:$0xff] %v591
    // Predicated region
    $region18: #{tpu_custom_call.1} parent=1 // pred_check
      _
    $region19: #{tpu_custom_call.1} parent=1 // pred_check_branch
      %596 = sbr.rel (0) target = $region21
    $region20: #{tpu_custom_call.1} parent=1 // pred_region
      %s598 = ssub.s32 1024, 1024
      %599 = vsyncadd [#allocation4], %s598
      %s600 = sshll.u32 [#allocation7], 4
      %s601 = int_to_ptr.vmem [resolvable:$true] %s600
      %606 = dma.vmem_to_hbm [thread:$0]  %s601, 1024, %s2, [#allocation4], 128, 128, 8
    $region21: #{tpu_custom_call.1} parent=1 // pred_fallthru
      _
    // Predicated region
    $region22: #{tpu_custom_call.1} parent=1 // pred_check
      _
    $region23: #{tpu_custom_call.1} parent=1 // pred_check_branch
      %608 = sbr.rel (0) target = $region25
    $region24: #{tpu_custom_call.1} parent=1 // pred_region
      %609 = dma.done [#allocation4], 1024
    $region25: #{tpu_custom_call.1} parent=1 // pred_fallthru
      _
    %610 = vsyncpa [#allocation3], 1
    %611 = vsyncpa [#allocation4], 1
    %612 = vsyncpa [#allocation5], 1

</llo_original>
